<compile_context>
chip_gen: v5e
topology: v5e:2x2
jax: 0.10.0
libtpu: 0.0.40
codegen_flags: <defaults>
</compile_context>

<pallas_src>
import numpy as np
import jax
import jax.numpy as jnp
from jax.experimental import pallas as pl
from jax.experimental.pallas import tpu as pltpu

QUBITS = 4          # n_qubits
DEPTH = 2           # q_depth
DELTA = 0.1         # init scale of q_params
DIM = 2 ** QUBITS   # statevector dimension
BATCH = 2
ZPAD = 128          # lane-dense padding of the expectation-value axis
TILE_B = 256        # batch rows per grid step (when batch is large)


# ----------------------------- gate / unitary construction (parameter setup, plain numpy) ---

def _ry(theta):
    c, s = np.cos(theta / 2.0), np.sin(theta / 2.0)
    return np.array([[c, -s], [s, c]], dtype=np.float64)


def _kron_all(mats):
    out = mats[0]
    for m in mats[1:]:
        out = np.kron(out, m)
    return out


def _ry_layer_unitary(weights_row):
    # RY(w[j]) on every qubit j (qubit 0 = MSB -> leftmost factor of the kron).
    return _kron_all([_ry(float(weights_row[j])) for j in range(QUBITS)])


def _cnot_unitary(control, target):
    m = np.zeros((DIM, DIM), dtype=np.float64)
    for s in range(DIM):
        cbit = (s >> (QUBITS - 1 - control)) & 1
        sp = s ^ (1 << (QUBITS - 1 - target)) if cbit else s
        m[sp, s] = 1.0
    return m


def build_circuit_unitary(q_params_flat):
    """Unitary of the `depth` parameterized layers (acts after H + RY(q_in))."""
    # TODO(synk): `QuantumCircuit.layer` is abstract in the reference module; this is the
    # standard RY + CNOT-brick entangling layer used with it.
    w = np.asarray(q_params_flat, dtype=np.float64).reshape(DEPTH, QUBITS)
    u = np.eye(DIM, dtype=np.float64)
    for k in range(DEPTH):
        u = _ry_layer_unitary(w[k]) @ u
        for i in range(0, QUBITS - 1, 2):
            u = _cnot_unitary(i, i + 1) @ u
        for i in range(1, QUBITS - 1, 2):
            u = _cnot_unitary(i, i + 1) @ u
    return u


def pauli_z_signs():
    # Z[s, j] = +1 if bit of qubit j in basis state s is 0, else -1.
    s = np.arange(DIM)[:, None]
    j = np.arange(QUBITS)[None, :]
    bits = (s >> (QUBITS - 1 - j)) & 1
    return (1.0 - 2.0 * bits).astype(np.float64)


def pauli_z_signs_padded():
    # Zero-pad the sign matrix to a lane-dense [DIM, 128] slab (extra columns contribute 0).
    z = np.zeros((DIM, ZPAD), dtype=np.float32)
    z[:, :QUBITS] = pauli_z_signs().astype(np.float32)
    return z


# ----------------------------- per-element initial state (glue, plain JAX) ------------------

def initial_states(q_in):
    """psi0[b] = tensor_prod_j RY(q_in[b, j]) H |0>  -> shape [batch, 2^n], real."""
    inv_sqrt2 = 1.0 / np.sqrt(2.0)
    c = jnp.cos(q_in / 2.0)
    s = jnp.sin(q_in / 2.0)
    v0 = (c - s) * inv_sqrt2  # amplitude of |0> per qubit
    v1 = (c + s) * inv_sqrt2  # amplitude of |1> per qubit
    vq = jnp.stack([v0, v1], axis=-1)          # [B, n, 2]
    psi = vq[:, 0, :]                          # qubit 0 = MSB
    for j in range(1, QUBITS):
        psi = (psi[:, :, None] * vq[:, j, None, :]).reshape(psi.shape[0], -1)
    return psi.astype(jnp.float32)             # [B, 2^n]


# ----------------------------- Pallas kernel (hot path) -------------------------------------

def quantum_kernel(psi0_ref, ut_ref, z_ref, out_ref):
    # psi_rows = psi0_rows @ U^T  (statevector after the full circuit), f32 MXU accumulation.
    psi = jnp.dot(psi0_ref[...], ut_ref[...], preferred_element_type=jnp.float32)
    probs = psi * psi                                          # |amplitude|^2 (real state)
    # <Z_j> = sum_s probs[s] * sign(s, j)   (lane-dense padded output, unmasked stores)
    out_ref[...] = jnp.dot(probs, z_ref[...], preferred_element_type=jnp.float32)


def quantum_forward(psi0, ut, z_pad):
    """psi0: [B, 2^n] f32, ut: [2^n, 2^n] f32 (= U^T), z_pad: [2^n, 128] f32.

    Returns [B, QUBITS] f32 expectation values.
    """
    b = psi0.shape[0]
    # Tile batch with a grid; block rows must be a multiple of 8 (f32 sublane).
    tb = TILE_B if b >= TILE_B else max(8, ((b + 7) // 8) * 8)
    b_pad = ((b + tb - 1) // tb) * tb
    if b_pad != b:
        psi0 = jnp.pad(psi0, ((0, b_pad - b), (0, 0)))
    grid = (b_pad // tb,)

    flops = 2 * b_pad * DIM * DIM + 2 * b_pad * DIM * ZPAD
    bytes_accessed = 4 * (b_pad * DIM + DIM * DIM + DIM * ZPAD + b_pad * ZPAD)

    out = pl.pallas_call(
        quantum_kernel,
        out_shape=jax.ShapeDtypeStruct((b_pad, ZPAD), jnp.float32),
        grid_spec=pl.GridSpec(
            grid=grid,
            in_specs=[
                # psi0 stream: (tb, 16) block per grid step -> auto double-buffered
                pl.BlockSpec((tb, DIM), lambda i: (i, 0)),
                # U^T and padded Z signs: VMEM-resident across all grid steps
                pl.BlockSpec((DIM, DIM), lambda i: (0, 0)),
                pl.BlockSpec((DIM, ZPAD), lambda i: (0, 0)),
            ],
            out_specs=pl.BlockSpec((tb, ZPAD), lambda i: (i, 0)),
        ),
        compiler_params=pltpu.CompilerParams(
            dimension_semantics=("parallel",),   # batch axis: megacore-shardable on v7x
        ),
        cost_estimate=pl.CostEstimate(
            flops=flops, transcendentals=0, bytes_accessed=bytes_accessed),
    )(psi0, ut, z_pad)

    return out[:b, :QUBITS]


# ----------------------------- driver --------------------------------------------------------

if __name__ == "__main__":
    key = jax.random.PRNGKey(0)
    k_in, k_par = jax.random.split(key)

    # q_in: batch of input angles, one per qubit (what the RY embedding layer consumes).
    q_in = jax.random.uniform(k_in, (BATCH, QUBITS), dtype=jnp.float32,
                              minval=-np.pi, maxval=np.pi)
    # q_params: flat trainable weights, depth * params_per_layer, init scale `delta`.
    q_params = DELTA * jax.random.normal(k_par, (DEPTH * QUBITS,), dtype=jnp.float32)

    # Circuit constants (depend only on q_params) -- built once, kept as f32 device arrays.
    u_np = build_circuit_unitary(np.asarray(jax.device_get(q_params)))
    ut = jnp.asarray(u_np.T, dtype=jnp.float32)              # [2^n, 2^n]
    z_pad = jnp.asarray(pauli_z_signs_padded())               # [2^n, 128]

    psi0 = initial_states(q_in)                                # [B, 2^n]

    q_out = quantum_forward(psi0, ut, z_pad)
    q_out = jax.block_until_ready(q_out)

    # numpy reference (same math, no Pallas) for a sanity check
    psi0_np = np.asarray(jax.device_get(psi0), dtype=np.float64)
    zmat = pauli_z_signs()
    ref = (np.square(psi0_np @ u_np.T) @ zmat).astype(np.float32)
    np.testing.assert_allclose(np.asarray(q_out), ref, atol=1e-5, rtol=1e-5)

    assert q_out.shape == (BATCH, QUBITS) and q_out.dtype == jnp.float32
    print("KERNEL_OK")
</pallas_src>

<mosaic_0001>
module attributes {stable_mosaic.version = 11 : i64} {
  func.func @quantum_kernel(%arg0: i32, %arg1: memref<8x16xf32, #tpu.memory_space<vmem>>, %arg2: memref<16x16xf32, #tpu.memory_space<vmem>>, %arg3: memref<16x128xf32, #tpu.memory_space<vmem>>, %arg4: memref<8x128xf32, #tpu.memory_space<vmem>>) attributes {dimension_semantics = [#tpu.dimension_semantics<parallel>], iteration_bounds = array<i64: 1>, scalar_prefetch = 0 : i64, scratch_operands = 0 : i64, tpu.core_type = #tpu.core_type<tc>, window_params = [{transform_indices = @transform_0, window_bounds = array<i64: 8, 16>}, {pipeline_mode = #tpu.pipeline_mode<synchronous>, transform_indices = @transform_1, window_bounds = array<i64: 16, 16>}, {pipeline_mode = #tpu.pipeline_mode<synchronous>, transform_indices = @transform_2, window_bounds = array<i64: 16, 128>}, {transform_indices = @transform_3, window_bounds = array<i64: 8, 128>}]} {
    %c0 = arith.constant 0 : index
    %c0_0 = arith.constant 0 : index
    %0 = vector.load %arg1[%c0, %c0_0] : memref<8x16xf32, #tpu.memory_space<vmem>>, vector<8x16xf32>
    %c0_1 = arith.constant 0 : index
    %c0_2 = arith.constant 0 : index
    %1 = vector.load %arg2[%c0_1, %c0_2] : memref<16x16xf32, #tpu.memory_space<vmem>>, vector<16x16xf32>
    %cst = arith.constant dense<0.000000e+00> : vector<8x16xf32>
    %2 = tpu.matmul %0, %1, %cst {dimension_numbers = #tpu.dot_dimension_numbers<[1], [0], [0], [1], [0, 0, 1, 1], [], []>} : vector<8x16xf32>, vector<16x16xf32>, vector<8x16xf32> -> vector<8x16xf32>
    %3 = arith.mulf %2, %2 : vector<8x16xf32>
    %c0_3 = arith.constant 0 : index
    %c0_4 = arith.constant 0 : index
    %4 = vector.load %arg3[%c0_3, %c0_4] : memref<16x128xf32, #tpu.memory_space<vmem>>, vector<16x128xf32>
    %cst_5 = arith.constant dense<0.000000e+00> : vector<8x128xf32>
    %5 = tpu.matmul %3, %4, %cst_5 {dimension_numbers = #tpu.dot_dimension_numbers<[1], [0], [0], [1], [0, 0, 1, 1], [], []>} : vector<8x16xf32>, vector<16x128xf32>, vector<8x128xf32> -> vector<8x128xf32>
    %c0_6 = arith.constant 0 : index
    %c0_7 = arith.constant 0 : index
    %6 = vector.load %arg4[%c0_6, %c0_7] : memref<8x128xf32, #tpu.memory_space<vmem>>, vector<8x128xf32>
    tpu.vector_store %arg4[%c0_6, %c0_7], %5 {strides = array<i32>} : memref<8x128xf32, #tpu.memory_space<vmem>>, vector<8x128xf32>,
    return
  }
  func.func @transform_0(%arg0: i32) -> (i32, i32) {
    %c0_i32 = arith.constant 0 : i32
    %c0_i32_0 = arith.constant 0 : i32
    return %arg0, %c0_i32 : i32, i32
  }
  func.func @transform_1(%arg0: i32) -> (i32, i32) {
    %c0_i32 = arith.constant 0 : i32
    %c0_i32_0 = arith.constant 0 : i32
    %c0_i32_1 = arith.constant 0 : i32
    return %c0_i32, %c0_i32_0 : i32, i32
  }
  func.func @transform_2(%arg0: i32) -> (i32, i32) {
    %c0_i32 = arith.constant 0 : i32
    %c0_i32_0 = arith.constant 0 : i32
    %c0_i32_1 = arith.constant 0 : i32
    return %c0_i32, %c0_i32_0 : i32, i32
  }
  func.func @transform_3(%arg0: i32) -> (i32, i32) {
    %c0_i32 = arith.constant 0 : i32
    %c0_i32_0 = arith.constant 0 : i32
    return %arg0, %c0_i32 : i32, i32
  }
}

</mosaic_0001>

<llo_original>
// kernel: tpu_custom_call.1
$region0: #{tpu_custom_call.1}
  #allocation0 [shape = 'u32[]', space=smem, size = 0x4, offset = 0x4, fixed_abs, tag = 'smem constant byte address 0x4 - core index']
  #allocation1 [shape = 'u32[72,128]{1,0:T(1,128)}', space=vmem, size = 0x9000, scoped, tag = 'internal scratch']
  %s0 = inlined_call_operand.hbm [shape: f32[8,16], index: 0, kind: input, shape index: {}]
  %s1 = inlined_call_operand.hbm [shape: f32[16,16], index: 1, kind: input, shape index: {}]
  %s2 = inlined_call_operand.hbm [shape: f32[16,128], index: 2, kind: input, shape index: {}]
  %s3 = inlined_call_operand.hbm [shape: f32[8,128], index: 3, kind: output, shape index: {}]
  %s4 = sld [smem:[#allocation0]]
  $region34: #{tpu_custom_call.1} parent=0
    _
  %s6 = ssub.s32 1, %s4
  %s7 = scalar_select 0, %s6, %s4
  $region1: #{tpu_custom_call.1} parent=0
    #allocation2 [shape = 'u8[4096]{0}', space=vmem, size = 0x1000, scoped, tag = 'input window, operand 0, single buffered']
    #allocation3 [shape = 's32[1]{0}', space=sflag, size = 0x4, scoped, tag = 'scoped memory for tpu_custom_call.1']
    #allocation4 [shape = 's32[1]{0}', space=sflag, size = 0x4, scoped, tag = 'scoped memory for tpu_custom_call.1']
    #allocation5 [shape = 'u8[8192]{0}', space=vmem, size = 0x2000, scoped, tag = 'input window, operand 1, single buffered']
    #allocation6 [shape = 's32[1]{0}', space=sflag, size = 0x4, scoped, tag = 'scoped memory for tpu_custom_call.1']
    #allocation7 [shape = 'u8[8192]{0}', space=vmem, size = 0x2000, scoped, tag = 'input window, operand 2, single buffered']
    #allocation8 [shape = 'u8[4096]{0}', space=vmem, size = 0x1000, scoped, tag = 'output window, operand 0, single buffered']
    %8 = vsyncpa [#allocation3], 0
    %9 = vsyncpa [#allocation6], 0
    %10 = vsyncpa [#allocation4], 0
    // Predicated region
    $region2: #{tpu_custom_call.1} parent=1 // pred_check
      _
    $region3: #{tpu_custom_call.1} parent=1 // pred_check_branch
      %12 = sbr.rel (0) target = $region5
    $region4: #{tpu_custom_call.1} parent=1 // pred_region
      %14 = vsyncadd [#allocation3], 0
      %s16 = sshll.u32 %s0, 4
      %s17 = int_to_ptr.hbm [resolvable:$true] %s16
      %s18 = sshll.u32 [#allocation2], 4
      %s19 = int_to_ptr.vmem [resolvable:$true] %s18
      %21 = dma.hbm_to_vmem [thread:$0]  %s17, 128, %s19, [#allocation3]
    $region5: #{tpu_custom_call.1} parent=1 // pred_fallthru
      _
    // Predicated region
    $region6: #{tpu_custom_call.1} parent=1 // pred_check
      _
    $region7: #{tpu_custom_call.1} parent=1 // pred_check_branch
      %23 = sbr.rel (0) target = $region9
    $region8: #{tpu_custom_call.1} parent=1 // pred_region
      %25 = vsyncadd [#allocation6], 0
      %s26 = sshll.u32 %s1, 4
      %s27 = int_to_ptr.hbm [resolvable:$true] %s26
      %s28 = sshll.u32 [#allocation5], 4
      %s29 = int_to_ptr.vmem [resolvable:$true] %s28
      %34 = dma.hbm_to_vmem [thread:$0]  %s27, 256, %s29, [#allocation6], 128, 128, 8
    $region9: #{tpu_custom_call.1} parent=1 // pred_fallthru
      _
    // Predicated region
    $region10: #{tpu_custom_call.1} parent=1 // pred_check
      _
    $region11: #{tpu_custom_call.1} parent=1 // pred_check_branch
      %36 = sbr.rel (0) target = $region13
    $region12: #{tpu_custom_call.1} parent=1 // pred_region
      %38 = vsyncadd [#allocation6], 0
      %s39 = sshll.u32 %s2, 4
      %s40 = int_to_ptr.hbm [resolvable:$true] %s39
      %s41 = sshll.u32 [#allocation7], 4
      %s42 = int_to_ptr.vmem [resolvable:$true] %s41
      %47 = dma.hbm_to_vmem [thread:$0]  %s40, 256, %s42, [#allocation6], 128, 128, 8
    $region13: #{tpu_custom_call.1} parent=1 // pred_fallthru
      _
    // Predicated region
    $region14: #{tpu_custom_call.1} parent=1 // pred_check
      _
    $region15: #{tpu_custom_call.1} parent=1 // pred_check_branch
      %49 = sbr.rel (0) target = $region17
    $region16: #{tpu_custom_call.1} parent=1 // pred_region
      %51 = dma.done [#allocation3], 128
    $region17: #{tpu_custom_call.1} parent=1 // pred_fallthru
      _
    // Predicated region
    $region18: #{tpu_custom_call.1} parent=1 // pred_check
      _
    $region19: #{tpu_custom_call.1} parent=1 // pred_check_branch
      %53 = sbr.rel (0) target = $region21
    $region20: #{tpu_custom_call.1} parent=1 // pred_region
      %55 = dma.done [#allocation6], 256
    $region21: #{tpu_custom_call.1} parent=1 // pred_fallthru
      _
    // Predicated region
    $region22: #{tpu_custom_call.1} parent=1 // pred_check
      _
    $region23: #{tpu_custom_call.1} parent=1 // pred_check_branch
      %57 = sbr.rel (0) target = $region25
    $region24: #{tpu_custom_call.1} parent=1 // pred_region
      %59 = dma.done [#allocation6], 256
    $region25: #{tpu_custom_call.1} parent=1 // pred_fallthru
      _
    %v60 = vld [vmem:[#allocation2] sm:$0xff]
    %v61 = vld [vmem:[#allocation5] sm:$0xff]
    %v62 = vld [vmem:[#allocation5 + $0x8] sm:$0xff]
    %vm63 = vcmask 130048
    %v65 = vsel %vm63, %v60, 0
    %67 = vmatpush.msra.mxu0 0.0
    %68 = vmatpush.msra.mxu0 0.0
    %69 = vmatpush.msra.mxu0 0.0
    %70 = vmatpush.msra.mxu0 0.0
    %71 = vmatpush.msra.mxu0 0.0
    %72 = vmatpush.msra.mxu0 0.0
    %73 = vmatpush.msra.mxu0 0.0
    %74 = vmatpush.msra.mxu0 0.0
    %75 = vmatpush.msra.mxu0 0.0
    %76 = vmatpush.msra.mxu0 0.0
    %77 = vmatpush.msra.mxu0 0.0
    %78 = vmatpush.msra.mxu0 0.0
    %79 = vmatpush.msra.mxu0 0.0
    %80 = vmatpush.msra.mxu0 0.0
    %81 = vmatpush.msra.mxu0 %v62
    %82 = vmatpush.msra.mxu0 %v61
    %83 = vmatmul.f32.gmra.mxu0 %v65
    %v84 = vpop.f32.mrf.mxu0
    %v85 = vadd.f32 0.0, %v84
    %86 = vdwg.mxu0
    %v87 = vmul.f32 %v85, %v85
    %v88 = vld [vmem:[#allocation7] sm:$0xff]
    %v89 = vld [vmem:[#allocation7 + $0x8] sm:$0xff]
    %v91 = vsel %vm63, %v87, 0
    %93 = vmatpush.msra.mxu0 0.0
    %94 = vmatpush.msra.mxu0 0.0
    %95 = vmatpush.msra.mxu0 0.0
    %96 = vmatpush.msra.mxu0 0.0
    %97 = vmatpush.msra.mxu0 0.0
    %98 = vmatpush.msra.mxu0 0.0
    %99 = vmatpush.msra.mxu0 0.0
    %100 = vmatpush.msra.mxu0 0.0
    %101 = vmatpush.msra.mxu0 0.0
    %102 = vmatpush.msra.mxu0 0.0
    %103 = vmatpush.msra.mxu0 0.0
    %104 = vmatpush.msra.mxu0 0.0
    %105 = vmatpush.msra.mxu0 0.0
    %106 = vmatpush.msra.mxu0 0.0
    %107 = vmatpush.msra.mxu0 %v89
    %108 = vmatpush.msra.mxu0 %v88
    %109 = vmatmul.f32.gmra.mxu0 %v91
    %v110 = vpop.f32.mrf.mxu0
    %v111 = vadd.f32 0.0, %v110
    %112 = vdwg.mxu0
    %113 = vst [vmem:[#allocation8] sm:$0xff] %v111
    // Predicated region
    $region26: #{tpu_custom_call.1} parent=1 // pred_check
      _
    $region27: #{tpu_custom_call.1} parent=1 // pred_check_branch
      %115 = sbr.rel (0) target = $region29
    $region28: #{tpu_custom_call.1} parent=1 // pred_region
      %117 = vsyncadd [#allocation4], 0
      %s119 = sshll.u32 [#allocation8], 4
      %s120 = int_to_ptr.vmem [resolvable:$true] %s119
      %s121 = sshll.u32 %s3, 4
      %s122 = int_to_ptr.hbm [resolvable:$true] %s121
      %124 = dma.vmem_to_hbm [thread:$0]  %s120, 128, %s122, [#allocation4]
    $region29: #{tpu_custom_call.1} parent=1 // pred_fallthru
      _
    // Predicated region
    $region30: #{tpu_custom_call.1} parent=1 // pred_check
      _
    $region31: #{tpu_custom_call.1} parent=1 // pred_check_branch
      %126 = sbr.rel (0) target = $region33
    $region32: #{tpu_custom_call.1} parent=1 // pred_region
      %128 = dma.done [#allocation4], 128
    $region33: #{tpu_custom_call.1} parent=1 // pred_fallthru
      _
    %129 = vsyncpa [#allocation3], 1
    %130 = vsyncpa [#allocation6], 1
    %131 = vsyncpa [#allocation4], 1

</llo_original>
